<compile_context>
chip_gen: v7x
topology: tpu7x:2x2x1
jax: 0.10.0
libtpu: 0.0.40
codegen_flags: <defaults>
</compile_context>

<pallas_src>
import jax
import jax.numpy as jnp
from jax.experimental import pallas as pl
from jax.experimental.pallas import tpu as pltpu

# ----------------------------- configuration --------------------------------
B = 2     # batch
L = 8     # language sequence length
H = 32    # hidden size
A = 8     # args.angle_feat_size
N = 6     # number of candidate viewpoints (visual sequence length)
LN_EPS = 1e-12          # LXMERT layer_norm_eps (and head LayerNorms)
UPDATE_STATE = True     # args.update_state (state_lang only feeds the stub)
DECISION_MODE = "hamt"  # args.decision_mode

# ----------------------- packed-slab layout constants ------------------------
# activation slab (B, ACT_COLS); every segment is 32-lane aligned:
ACT_LANG_CLS = 0          # lang_feats[:, 0, :]             (H)
ACT_ANGLE = H             # action_angle_feat, zero-padded  (H, valid A)
ACT_HT = 2 * H            # h_t                             (H)
ACT_ATT_LANG = 3 * H      # attended_language               (H)
ACT_ATT_VIS = 4 * H       # attended_visual                 (H)
ACT_LANG_OUT = 5 * H      # lang_output[:, 0, :]            (H)
ACT_COLS = 6 * H          # 192

# weight slab (W_ROWS, H); row offsets:
W_SA = 0                  # state_action_project weight, padded to (2H, H)
W_PRJ = 2 * H             # state_prj weight (2H, H)
W_1 = 4 * H               # NextCandidatePrediction Linear(H,H)  (H, H)
W_2 = 5 * H               # NextCandidatePrediction Linear(H,1) as a (1, H) row
VEC0 = W_2 + 1            # 12 packed (1, H) vector rows follow:
#   +0 b_sa  +1 g_sa  +2 be_sa  +3 g_lv  +4 be_lv  +5 b_prj
#   +6 g_st  +7 be_st +8 b1     +9 g_np  +10 be_np +11 b2 (broadcast row)
N_VEC = 12
W_ROWS = ((VEC0 + N_VEC + 7) // 8) * 8    # pad rows to a sublane multiple (176)

OUT_COLS = 4 * H          # lane-dense 128-wide output slab


# ------------------------------- kernel --------------------------------------
def _layer_norm(x, gamma, beta, eps=LN_EPS):
    mu = jnp.mean(x, axis=-1, keepdims=True)
    var = jnp.mean((x - mu) * (x - mu), axis=-1, keepdims=True)
    return (x - mu) * jax.lax.rsqrt(var + eps) * gamma + beta


def fused_head_kernel(act_ref, vis_ref, w_ref, out_ref):
    def vec(i):
        return w_ref[VEC0 + i:VEC0 + i + 1, :]             # (1, H)

    act = act_ref[...]                                      # (B, 192)

    # --- state_action = LN(Linear(cat([lang_cls, angle_feat]))) -------------
    # angle feat is zero-padded to H and W_sa has matching zero rows, so one
    # contiguous (B, 2H) x (2H, H) matmul reproduces the split projection.
    sa_in = act[:, ACT_LANG_CLS:ACT_LANG_CLS + 2 * H]       # (B, 2H)
    sa = jnp.dot(sa_in, w_ref[W_SA:W_SA + 2 * H, :],
                 preferred_element_type=jnp.float32) + vec(0)
    sa = _layer_norm(sa, vec(1), vec(2))

    # --- vis_lang = LN(attended_language * attended_visual) -----------------
    vis_lang = _layer_norm(
        act[:, ACT_ATT_LANG:ACT_ATT_LANG + H]
        * act[:, ACT_ATT_VIS:ACT_ATT_VIS + H],
        vec(3), vec(4))

    # --- state = LN(Linear(cat([h_t, vis_lang]))) ----------------------------
    st_in = jnp.concatenate([act[:, ACT_HT:ACT_HT + H], vis_lang], axis=-1)
    st = jnp.dot(st_in, w_ref[W_PRJ:W_PRJ + 2 * H, :],
                 preferred_element_type=jnp.float32) + vec(5)
    st = _layer_norm(st, vec(6), vec(7))

    # --- NextCandidatePrediction ---------------------------------------------
    lang_out_cls = act[:, ACT_LANG_OUT:ACT_LANG_OUT + H]    # (B, H)
    x = vis_ref[...] * lang_out_cls[:, None, :]             # (B, N, H)
    y = jnp.einsum("bnh,hk->bnk", x, w_ref[W_1:W_1 + H, :],
                   preferred_element_type=jnp.float32) + vec(8)
    y = jnp.maximum(y, 0.0)
    y = _layer_norm(y, vec(9), vec(10))
    # TODO(synk): nn.Dropout(0.3) skipped (eval-mode identity).
    # H -> 1 projection on the VPU/XLU (multiply + lane reduce), not the MXU.
    w2_row = w_ref[W_2:W_2 + 1, :]                           # (1, H)
    b2 = vec(11)[0:1, 0:1]                                   # (1, 1)
    logits = jnp.sum(y * w2_row, axis=-1, keepdims=True) + b2  # (B, N, 1)
    preds = logits[..., 0]                                   # (B, N)

    # --- single lane-dense (B, 128) output slab ------------------------------
    out_ref[:, 0:H] = st
    out_ref[:, H:2 * H] = sa
    out_ref[:, 2 * H:2 * H + N] = preds
    out_ref[:, 2 * H + N:] = jnp.zeros((B, OUT_COLS - 2 * H - N), jnp.float32)


# ------------------------------ wrappers -------------------------------------
def _full_spec(shape):
    nd = len(shape)
    return pl.BlockSpec(shape, lambda i, _n=nd: (0,) * _n)


def _pack_weight_slab(p):
    zrows = jnp.zeros((2 * H - (H + A), H), jnp.float32)
    rows = [
        p["w_sa_h"], p["w_sa_a"], zrows,            # W_SA padded to (2H, H)
        p["w_prj_h"], p["w_prj_v"],                 # W_PRJ (2H, H)
        p["w1"],                                    # (H, H)
        p["w2"].T,                                  # (1, H) row for VPU reduce
        p["b_sa"], p["g_sa"], p["be_sa"],
        p["g_lv"], p["be_lv"],
        p["b_prj"], p["g_st"], p["be_st"],
        p["b1"], p["g_np"], p["be_np"],
        jnp.full((1, H), p["b2"][0, 0], jnp.float32),
    ]
    slab = jnp.concatenate(rows, axis=0)             # (173, H)
    pad = W_ROWS - slab.shape[0]
    return jnp.concatenate([slab, jnp.zeros((pad, H), jnp.float32)], axis=0)


def _pack_act_slab(lang_cls, action_angle, h_t, att_lang, att_vis,
                   lang_out_cls):
    aa = jnp.pad(action_angle, ((0, 0), (0, H - A)))
    return jnp.concatenate(
        [lang_cls, aa, h_t, att_lang, att_vis, lang_out_cls], axis=-1)


def run_fused_head(act_slab, visual_output, w_slab):
    return pl.pallas_call(
        fused_head_kernel,
        out_shape=jax.ShapeDtypeStruct((B, OUT_COLS), jnp.float32),
        grid=(1,),
        in_specs=[_full_spec((B, ACT_COLS)),
                  _full_spec((B, N, H)),
                  _full_spec((W_ROWS, H))],
        out_specs=_full_spec((B, OUT_COLS)),
        compiler_params=pltpu.CompilerParams(
            dimension_semantics=("arbitrary",)),
    )(act_slab, visual_output, w_slab)


@jax.jit
def vln_lxmert_visual_forward(params, lang_feats, action_angle_feat,
                              visual_feats, backbone_outputs):
    """Mirrors VLNLXMERT.forward(mode='visual') around the stubbed backbone.

    Returns (state, preds) like the PyTorch module, plus state_action for
    direct verification of the fused kernel (in the module it only feeds the
    stubbed backbone via state_lang).
    """
    del visual_feats
    # TODO(synk): drop_env(visual_feats[..., :-A]) and the state_lang concat
    # only feed the stubbed LXMERT backbone (eval-mode dropout is identity),
    # so no wrapper-side copies are materialized.
    h_t, rec_logits, att_lang, att_vis, lang_output, visual_output = (
        backbone_outputs
    )

    act_slab = _pack_act_slab(
        lang_feats[:, 0, :], action_angle_feat, h_t, att_lang, att_vis,
        lang_output[:, 0, :])
    w_slab = _pack_weight_slab(params)

    out = run_fused_head(act_slab, visual_output, w_slab)
    state = out[:, 0:H]
    state_action = out[:, H:2 * H]
    kernel_preds = out[:, 2 * H:2 * H + N]

    if DECISION_MODE == "recbert":
        preds = rec_logits
    elif DECISION_MODE == "hamt":
        preds = kernel_preds
    else:
        raise ValueError("unknown decision_mode.")
    return state, preds, state_action


# --------------------------- pure-JAX reference -------------------------------
def reference_forward(params, lang_feats, action_angle_feat, backbone_outputs):
    h_t, _, att_lang, att_vis, lang_output, visual_output = backbone_outputs
    lang_cls = lang_feats[:, 0, :]

    sa = (lang_cls @ params["w_sa_h"] + action_angle_feat @ params["w_sa_a"]
          + params["b_sa"])
    sa = _layer_norm(sa, params["g_sa"], params["be_sa"])

    vis_lang = _layer_norm(att_lang * att_vis, params["g_lv"], params["be_lv"])
    st = (h_t @ params["w_prj_h"] + vis_lang @ params["w_prj_v"]
          + params["b_prj"])
    st = _layer_norm(st, params["g_st"], params["be_st"])

    x = visual_output * lang_output[:, 0:1, :]
    y = jnp.maximum(
        jnp.einsum("bnh,hk->bnk", x, params["w1"]) + params["b1"], 0.0)
    y = _layer_norm(y, params["g_np"], params["be_np"])
    preds = (jnp.einsum("bnh,hk->bnk", y, params["w2"]) + params["b2"])[..., 0]
    return st, preds, sa


# --------------------------------- main ---------------------------------------
def make_params(key):
    ks = jax.random.split(key, 9)
    s = 0.05
    return {
        # state_action_project: Linear(H + A -> H), split & transposed
        "w_sa_h": jax.random.normal(ks[0], (H, H), jnp.float32) * s,
        "w_sa_a": jax.random.normal(ks[1], (A, H), jnp.float32) * s,
        "b_sa": jax.random.normal(ks[2], (1, H), jnp.float32) * s,
        "g_sa": jnp.ones((1, H), jnp.float32),
        "be_sa": jnp.zeros((1, H), jnp.float32),
        # lang_vis_ln
        "g_lv": jnp.ones((1, H), jnp.float32),
        "be_lv": jnp.zeros((1, H), jnp.float32),
        # state_prj: Linear(2H -> H), split & transposed
        "w_prj_h": jax.random.normal(ks[3], (H, H), jnp.float32) * s,
        "w_prj_v": jax.random.normal(ks[4], (H, H), jnp.float32) * s,
        "b_prj": jax.random.normal(ks[5], (1, H), jnp.float32) * s,
        "g_st": jnp.ones((1, H), jnp.float32),
        "be_st": jnp.zeros((1, H), jnp.float32),
        # NextCandidatePrediction: Linear(H,H)->ReLU->LN->Dropout->Linear(H,1)
        "w1": jax.random.normal(ks[6], (H, H), jnp.float32) * s,
        "b1": jnp.zeros((1, H), jnp.float32),
        "g_np": jnp.ones((1, H), jnp.float32),
        "be_np": jnp.zeros((1, H), jnp.float32),
        "w2": jax.random.normal(ks[7], (H, 1), jnp.float32) * s,
        "b2": jax.random.normal(ks[8], (1, 1), jnp.float32) * s,
    }


if __name__ == "__main__":
    key = jax.random.PRNGKey(0)
    k_param, k_in = jax.random.split(key)
    params = make_params(k_param)

    ki = jax.random.split(k_in, 9)
    lang_feats = jax.random.normal(ki[0], (B, L, H), jnp.float32)
    action_angle_feat = jax.random.normal(ki[1], (B, A), jnp.float32)
    visual_feats = jax.random.normal(ki[2], (B, N, H + A), jnp.float32)

    # Deterministic stand-ins for the LXMERT backbone's 'visual' outputs.
    h_t = jax.random.normal(ki[3], (B, H), jnp.float32)
    rec_logits = jax.random.normal(ki[4], (B, N), jnp.float32)
    att_lang = jax.random.normal(ki[5], (B, H), jnp.float32)
    att_vis = jax.random.normal(ki[6], (B, H), jnp.float32)
    lang_output = jax.random.normal(ki[7], (B, L, H), jnp.float32)
    visual_output = jax.random.normal(ki[8], (B, N, H), jnp.float32)
    backbone_outputs = (h_t, rec_logits, att_lang, att_vis,
                        lang_output, visual_output)

    state, preds, state_action = vln_lxmert_visual_forward(
        params, lang_feats, action_angle_feat, visual_feats, backbone_outputs
    )
    state = jax.block_until_ready(state)
    preds = jax.block_until_ready(preds)
    state_action = jax.block_until_ready(state_action)

    ref_state, ref_preds, ref_sa = reference_forward(
        params, lang_feats, action_angle_feat, backbone_outputs
    )
    assert state.shape == (B, H) and preds.shape == (B, N)
    assert state_action.shape == (B, H)
    assert jnp.allclose(state, ref_state, atol=1e-5, rtol=1e-5)
    assert jnp.allclose(preds, ref_preds, atol=1e-5, rtol=1e-5)
    assert jnp.allclose(state_action, ref_sa, atol=1e-5, rtol=1e-5)

    print("KERNEL_OK")
</pallas_src>

<mosaic_0001>
module attributes {stable_mosaic.version = 11 : i64} {
  func.func @fused_head_kernel(%arg0: i32, %arg1: memref<2x192xf32, #tpu.memory_space<vmem>>, %arg2: memref<2x6x32xf32, #tpu.memory_space<vmem>>, %arg3: memref<176x32xf32, #tpu.memory_space<vmem>>, %arg4: memref<2x128xf32, #tpu.memory_space<vmem>>) attributes {dimension_semantics = [#tpu.dimension_semantics<arbitrary>], iteration_bounds = array<i64: 1>, scalar_prefetch = 0 : i64, scratch_operands = 0 : i64, tpu.core_type = #tpu.core_type<tc>, window_params = [{pipeline_mode = #tpu.pipeline_mode<synchronous>, transform_indices = @transform_0, window_bounds = array<i64: 2, 192>}, {pipeline_mode = #tpu.pipeline_mode<synchronous>, transform_indices = @transform_1, window_bounds = array<i64: 2, 6, 32>}, {pipeline_mode = #tpu.pipeline_mode<synchronous>, transform_indices = @transform_2, window_bounds = array<i64: 176, 32>}, {pipeline_mode = #tpu.pipeline_mode<synchronous>, transform_indices = @transform_3, window_bounds = array<i64: 2, 128>}]} {
    %c0 = arith.constant 0 : index
    %c0_0 = arith.constant 0 : index
    %0 = vector.load %arg1[%c0, %c0_0] : memref<2x192xf32, #tpu.memory_space<vmem>>, vector<2x192xf32>
    %1 = vector.extract_strided_slice %0 {offsets = [0, 0], sizes = [2, 64], strides = [1, 1]} : vector<2x192xf32> to vector<2x64xf32>
    %c0_1 = arith.constant 0 : index
    %c0_2 = arith.constant 0 : index
    %2 = vector.load %arg3[%c0_1, %c0_2] : memref<176x32xf32, #tpu.memory_space<vmem>>, vector<64x32xf32>
    %cst = arith.constant dense<0.000000e+00> : vector<2x32xf32>
    %3 = tpu.matmul %1, %2, %cst {dimension_numbers = #tpu.dot_dimension_numbers<[1], [0], [0], [1], [0, 0, 1, 1], [], []>} : vector<2x64xf32>, vector<64x32xf32>, vector<2x32xf32> -> vector<2x32xf32>
    %c161 = arith.constant 161 : index
    %c0_3 = arith.constant 0 : index
    %4 = vector.load %arg3[%c161, %c0_3] : memref<176x32xf32, #tpu.memory_space<vmem>>, vector<1x32xf32>
    %5 = vector.broadcast %4 : vector<1x32xf32> to vector<2x32xf32>
    %6 = arith.addf %3, %5 : vector<2x32xf32>
    %c162 = arith.constant 162 : index
    %c0_4 = arith.constant 0 : index
    %7 = vector.load %arg3[%c162, %c0_4] : memref<176x32xf32, #tpu.memory_space<vmem>>, vector<1x32xf32>
    %c163 = arith.constant 163 : index
    %c0_5 = arith.constant 0 : index
    %8 = vector.load %arg3[%c163, %c0_5] : memref<176x32xf32, #tpu.memory_space<vmem>>, vector<1x32xf32>
    %cst_6 = arith.constant dense<0.000000e+00> : vector<2xf32>
    %9 = vector.multi_reduction <add>, %6, %cst_6 [1] : vector<2x32xf32> to vector<2xf32>
    %10 = vector.shape_cast %9 : vector<2xf32> to vector<2x1xf32>
    %cst_7 = arith.constant 3.200000e+01 : f32
    %11 = vector.broadcast %cst_7 : f32 to vector<2x1xf32>
    %12 = arith.divf %10, %11 : vector<2x1xf32>
    %13 = vector.broadcast %12 : vector<2x1xf32> to vector<2x32xf32>
    %14 = arith.subf %6, %13 : vector<2x32xf32>
    %15 = vector.broadcast %12 : vector<2x1xf32> to vector<2x32xf32>
    %16 = arith.subf %6, %15 : vector<2x32xf32>
    %17 = arith.mulf %14, %16 : vector<2x32xf32>
    %cst_8 = arith.constant dense<0.000000e+00> : vector<2xf32>
    %18 = vector.multi_reduction <add>, %17, %cst_8 [1] : vector<2x32xf32> to vector<2xf32>
    %19 = vector.shape_cast %18 : vector<2xf32> to vector<2x1xf32>
    %cst_9 = arith.constant 3.200000e+01 : f32
    %20 = vector.broadcast %cst_9 : f32 to vector<2x1xf32>
    %21 = arith.divf %19, %20 : vector<2x1xf32>
    %22 = vector.broadcast %12 : vector<2x1xf32> to vector<2x32xf32>
    %23 = arith.subf %6, %22 : vector<2x32xf32>
    %cst_10 = arith.constant 9.99999996E-13 : f32
    %24 = vector.broadcast %cst_10 : f32 to vector<2x1xf32>
    %25 = arith.addf %21, %24 : vector<2x1xf32>
    %26 = math.rsqrt %25 : vector<2x1xf32>
    %27 = vector.broadcast %26 : vector<2x1xf32> to vector<2x32xf32>
    %28 = arith.mulf %23, %27 : vector<2x32xf32>
    %29 = vector.broadcast %7 : vector<1x32xf32> to vector<2x32xf32>
    %30 = arith.mulf %28, %29 : vector<2x32xf32>
    %31 = vector.broadcast %8 : vector<1x32xf32> to vector<2x32xf32>
    %32 = arith.addf %30, %31 : vector<2x32xf32>
    %33 = vector.extract_strided_slice %0 {offsets = [0, 96], sizes = [2, 32], strides = [1, 1]} : vector<2x192xf32> to vector<2x32xf32>
    %34 = vector.extract_strided_slice %0 {offsets = [0, 128], sizes = [2, 32], strides = [1, 1]} : vector<2x192xf32> to vector<2x32xf32>
    %35 = arith.mulf %33, %34 : vector<2x32xf32>
    %c164 = arith.constant 164 : index
    %c0_11 = arith.constant 0 : index
    %36 = vector.load %arg3[%c164, %c0_11] : memref<176x32xf32, #tpu.memory_space<vmem>>, vector<1x32xf32>
    %c165 = arith.constant 165 : index
    %c0_12 = arith.constant 0 : index
    %37 = vector.load %arg3[%c165, %c0_12] : memref<176x32xf32, #tpu.memory_space<vmem>>, vector<1x32xf32>
    %cst_13 = arith.constant dense<0.000000e+00> : vector<2xf32>
    %38 = vector.multi_reduction <add>, %35, %cst_13 [1] : vector<2x32xf32> to vector<2xf32>
    %39 = vector.shape_cast %38 : vector<2xf32> to vector<2x1xf32>
    %cst_14 = arith.constant 3.200000e+01 : f32
    %40 = vector.broadcast %cst_14 : f32 to vector<2x1xf32>
    %41 = arith.divf %39, %40 : vector<2x1xf32>
    %42 = vector.broadcast %41 : vector<2x1xf32> to vector<2x32xf32>
    %43 = arith.subf %35, %42 : vector<2x32xf32>
    %44 = vector.broadcast %41 : vector<2x1xf32> to vector<2x32xf32>
    %45 = arith.subf %35, %44 : vector<2x32xf32>
    %46 = arith.mulf %43, %45 : vector<2x32xf32>
    %cst_15 = arith.constant dense<0.000000e+00> : vector<2xf32>
    %47 = vector.multi_reduction <add>, %46, %cst_15 [1] : vector<2x32xf32> to vector<2xf32>
    %48 = vector.shape_cast %47 : vector<2xf32> to vector<2x1xf32>
    %cst_16 = arith.constant 3.200000e+01 : f32
    %49 = vector.broadcast %cst_16 : f32 to vector<2x1xf32>
    %50 = arith.divf %48, %49 : vector<2x1xf32>
    %51 = vector.broadcast %41 : vector<2x1xf32> to vector<2x32xf32>
    %52 = arith.subf %35, %51 : vector<2x32xf32>
    %cst_17 = arith.constant 9.99999996E-13 : f32
    %53 = vector.broadcast %cst_17 : f32 to vector<2x1xf32>
    %54 = arith.addf %50, %53 : vector<2x1xf32>
    %55 = math.rsqrt %54 : vector<2x1xf32>
    %56 = vector.broadcast %55 : vector<2x1xf32> to vector<2x32xf32>
    %57 = arith.mulf %52, %56 : vector<2x32xf32>
    %58 = vector.broadcast %36 : vector<1x32xf32> to vector<2x32xf32>
    %59 = arith.mulf %57, %58 : vector<2x32xf32>
    %60 = vector.broadcast %37 : vector<1x32xf32> to vector<2x32xf32>
    %61 = arith.addf %59, %60 : vector<2x32xf32>
    %62 = vector.extract_strided_slice %0 {offsets = [0, 64], sizes = [2, 32], strides = [1, 1]} : vector<2x192xf32> to vector<2x32xf32>
    %63 = tpu.concatenate %62, %61 in 1 : vector<2x32xf32>, vector<2x32xf32> -> vector<2x64xf32>
    %c64 = arith.constant 64 : index
    %c0_18 = arith.constant 0 : index
    %64 = vector.load %arg3[%c64, %c0_18] : memref<176x32xf32, #tpu.memory_space<vmem>>, vector<64x32xf32>
    %cst_19 = arith.constant dense<0.000000e+00> : vector<2x32xf32>
    %65 = tpu.matmul %63, %64, %cst_19 {dimension_numbers = #tpu.dot_dimension_numbers<[1], [0], [0], [1], [0, 0, 1, 1], [], []>} : vector<2x64xf32>, vector<64x32xf32>, vector<2x32xf32> -> vector<2x32xf32>
    %c166 = arith.constant 166 : index
    %c0_20 = arith.constant 0 : index
    %66 = vector.load %arg3[%c166, %c0_20] : memref<176x32xf32, #tpu.memory_space<vmem>>, vector<1x32xf32>
    %67 = vector.broadcast %66 : vector<1x32xf32> to vector<2x32xf32>
    %68 = arith.addf %65, %67 : vector<2x32xf32>
    %c167 = arith.constant 167 : index
    %c0_21 = arith.constant 0 : index
    %69 = vector.load %arg3[%c167, %c0_21] : memref<176x32xf32, #tpu.memory_space<vmem>>, vector<1x32xf32>
    %c168 = arith.constant 168 : index
    %c0_22 = arith.constant 0 : index
    %70 = vector.load %arg3[%c168, %c0_22] : memref<176x32xf32, #tpu.memory_space<vmem>>, vector<1x32xf32>
    %cst_23 = arith.constant dense<0.000000e+00> : vector<2xf32>
    %71 = vector.multi_reduction <add>, %68, %cst_23 [1] : vector<2x32xf32> to vector<2xf32>
    %72 = vector.shape_cast %71 : vector<2xf32> to vector<2x1xf32>
    %cst_24 = arith.constant 3.200000e+01 : f32
    %73 = vector.broadcast %cst_24 : f32 to vector<2x1xf32>
    %74 = arith.divf %72, %73 : vector<2x1xf32>
    %75 = vector.broadcast %74 : vector<2x1xf32> to vector<2x32xf32>
    %76 = arith.subf %68, %75 : vector<2x32xf32>
    %77 = vector.broadcast %74 : vector<2x1xf32> to vector<2x32xf32>
    %78 = arith.subf %68, %77 : vector<2x32xf32>
    %79 = arith.mulf %76, %78 : vector<2x32xf32>
    %cst_25 = arith.constant dense<0.000000e+00> : vector<2xf32>
    %80 = vector.multi_reduction <add>, %79, %cst_25 [1] : vector<2x32xf32> to vector<2xf32>
    %81 = vector.shape_cast %80 : vector<2xf32> to vector<2x1xf32>
    %cst_26 = arith.constant 3.200000e+01 : f32
    %82 = vector.broadcast %cst_26 : f32 to vector<2x1xf32>
    %83 = arith.divf %81, %82 : vector<2x1xf32>
    %84 = vector.broadcast %74 : vector<2x1xf32> to vector<2x32xf32>
    %85 = arith.subf %68, %84 : vector<2x32xf32>
    %cst_27 = arith.constant 9.99999996E-13 : f32
    %86 = vector.broadcast %cst_27 : f32 to vector<2x1xf32>
    %87 = arith.addf %83, %86 : vector<2x1xf32>
    %88 = math.rsqrt %87 : vector<2x1xf32>
    %89 = vector.broadcast %88 : vector<2x1xf32> to vector<2x32xf32>
    %90 = arith.mulf %85, %89 : vector<2x32xf32>
    %91 = vector.broadcast %69 : vector<1x32xf32> to vector<2x32xf32>
    %92 = arith.mulf %90, %91 : vector<2x32xf32>
    %93 = vector.broadcast %70 : vector<1x32xf32> to vector<2x32xf32>
    %94 = arith.addf %92, %93 : vector<2x32xf32>
    %95 = vector.extract_strided_slice %0 {offsets = [0, 160], sizes = [2, 32], strides = [1, 1]} : vector<2x192xf32> to vector<2x32xf32>
    %c0_28 = arith.constant 0 : index
    %c0_29 = arith.constant 0 : index
    %c0_30 = arith.constant 0 : index
    %96 = vector.load %arg2[%c0_28, %c0_29, %c0_30] : memref<2x6x32xf32, #tpu.memory_space<vmem>>, vector<2x6x32xf32>
    %97 = vector.shape_cast %95 : vector<2x32xf32> to vector<2x1x32xf32>
    %98 = vector.broadcast %97 : vector<2x1x32xf32> to vector<2x6x32xf32>
    %99 = arith.mulf %96, %98 : vector<2x6x32xf32>
    %c128 = arith.constant 128 : index
    %c0_31 = arith.constant 0 : index
    %100 = vector.load %arg3[%c128, %c0_31] : memref<176x32xf32, #tpu.memory_space<vmem>>, vector<32x32xf32>
    "tpu.trace_start"() <{level = 10 : i32, message = "bnh,hk->bnk"}> : () -> ()
    %cst_32 = arith.constant dense<0.000000e+00> : vector<2x6x32xf32>
    %101 = tpu.matmul %99, %100, %cst_32 {dimension_numbers = #tpu.dot_dimension_numbers<[2], [0], [0, 1], [1], [0, 0, 0, 1, 1, 1], [], []>} : vector<2x6x32xf32>, vector<32x32xf32>, vector<2x6x32xf32> -> vector<2x6x32xf32>
    "tpu.trace_stop"() : () -> ()
    %c169 = arith.constant 169 : index
    %c0_33 = arith.constant 0 : index
    %102 = vector.load %arg3[%c169, %c0_33] : memref<176x32xf32, #tpu.memory_space<vmem>>, vector<1x32xf32>
    %103 = vector.shape_cast %102 : vector<1x32xf32> to vector<1x1x32xf32>
    %104 = vector.broadcast %103 : vector<1x1x32xf32> to vector<2x6x32xf32>
    %105 = arith.addf %101, %104 : vector<2x6x32xf32>
    %cst_34 = arith.constant 0.000000e+00 : f32
    %106 = vector.broadcast %cst_34 : f32 to vector<2x6x32xf32>
    %107 = arith.maximumf %105, %106 : vector<2x6x32xf32>
    %c170 = arith.constant 170 : index
    %c0_35 = arith.constant 0 : index
    %108 = vector.load %arg3[%c170, %c0_35] : memref<176x32xf32, #tpu.memory_space<vmem>>, vector<1x32xf32>
    %c171 = arith.constant 171 : index
    %c0_36 = arith.constant 0 : index
    %109 = vector.load %arg3[%c171, %c0_36] : memref<176x32xf32, #tpu.memory_space<vmem>>, vector<1x32xf32>
    %cst_37 = arith.constant dense<0.000000e+00> : vector<2x6xf32>
    %110 = vector.multi_reduction <add>, %107, %cst_37 [2] : vector<2x6x32xf32> to vector<2x6xf32>
    %111 = vector.shape_cast %110 : vector<2x6xf32> to vector<2x6x1xf32>
    %cst_38 = arith.constant 3.200000e+01 : f32
    %112 = vector.broadcast %cst_38 : f32 to vector<2x6x1xf32>
    %113 = arith.divf %111, %112 : vector<2x6x1xf32>
    %114 = vector.broadcast %113 : vector<2x6x1xf32> to vector<2x6x32xf32>
    %115 = arith.subf %107, %114 : vector<2x6x32xf32>
    %116 = vector.broadcast %113 : vector<2x6x1xf32> to vector<2x6x32xf32>
    %117 = arith.subf %107, %116 : vector<2x6x32xf32>
    %118 = arith.mulf %115, %117 : vector<2x6x32xf32>
    %cst_39 = arith.constant dense<0.000000e+00> : vector<2x6xf32>
    %119 = vector.multi_reduction <add>, %118, %cst_39 [2] : vector<2x6x32xf32> to vector<2x6xf32>
    %120 = vector.shape_cast %119 : vector<2x6xf32> to vector<2x6x1xf32>
    %cst_40 = arith.constant 3.200000e+01 : f32
    %121 = vector.broadcast %cst_40 : f32 to vector<2x6x1xf32>
    %122 = arith.divf %120, %121 : vector<2x6x1xf32>
    %123 = vector.broadcast %113 : vector<2x6x1xf32> to vector<2x6x32xf32>
    %124 = arith.subf %107, %123 : vector<2x6x32xf32>
    %cst_41 = arith.constant 9.99999996E-13 : f32
    %125 = vector.broadcast %cst_41 : f32 to vector<2x6x1xf32>
    %126 = arith.addf %122, %125 : vector<2x6x1xf32>
    %127 = math.rsqrt %126 : vector<2x6x1xf32>
    %128 = vector.broadcast %127 : vector<2x6x1xf32> to vector<2x6x32xf32>
    %129 = arith.mulf %124, %128 : vector<2x6x32xf32>
    %130 = vector.shape_cast %108 : vector<1x32xf32> to vector<1x1x32xf32>
    %131 = vector.broadcast %130 : vector<1x1x32xf32> to vector<2x6x32xf32>
    %132 = arith.mulf %129, %131 : vector<2x6x32xf32>
    %133 = vector.shape_cast %109 : vector<1x32xf32> to vector<1x1x32xf32>
    %134 = vector.broadcast %133 : vector<1x1x32xf32> to vector<2x6x32xf32>
    %135 = arith.addf %132, %134 : vector<2x6x32xf32>
    %c160 = arith.constant 160 : index
    %c0_42 = arith.constant 0 : index
    %136 = vector.load %arg3[%c160, %c0_42] : memref<176x32xf32, #tpu.memory_space<vmem>>, vector<1x32xf32>
    %c172 = arith.constant 172 : index
    %c0_43 = arith.constant 0 : index
    %137 = vector.load %arg3[%c172, %c0_43] : memref<176x32xf32, #tpu.memory_space<vmem>>, vector<1x32xf32>
    %138 = vector.extract_strided_slice %137 {offsets = [0, 0], sizes = [1, 1], strides = [1, 1]} : vector<1x32xf32> to vector<1x1xf32>
    %139 = vector.shape_cast %136 : vector<1x32xf32> to vector<1x1x32xf32>
    %140 = vector.broadcast %139 : vector<1x1x32xf32> to vector<2x6x32xf32>
    %141 = arith.mulf %135, %140 : vector<2x6x32xf32>
    %cst_44 = arith.constant dense<0.000000e+00> : vector<2x6xf32>
    %142 = vector.multi_reduction <add>, %141, %cst_44 [2] : vector<2x6x32xf32> to vector<2x6xf32>
    %143 = vector.shape_cast %142 : vector<2x6xf32> to vector<2x6x1xf32>
    %144 = vector.shape_cast %138 : vector<1x1xf32> to vector<1x1x1xf32>
    %145 = vector.broadcast %144 : vector<1x1x1xf32> to vector<2x6x1xf32>
    %146 = arith.addf %143, %145 : vector<2x6x1xf32>
    %147 = vector.shape_cast %146 : vector<2x6x1xf32> to vector<2x6xf32>
    %c0_45 = arith.constant 0 : index
    %c0_46 = arith.constant 0 : index
    %148 = vector.load %arg4[%c0_45, %c0_46] : memref<2x128xf32, #tpu.memory_space<vmem>>, vector<2x32xf32>
    tpu.vector_store %arg4[%c0_45, %c0_46], %94 {strides = array<i32>} : memref<2x128xf32, #tpu.memory_space<vmem>>, vector<2x32xf32>,
    %c0_47 = arith.constant 0 : index
    %c32 = arith.constant 32 : index
    %149 = vector.load %arg4[%c0_47, %c32] : memref<2x128xf32, #tpu.memory_space<vmem>>, vector<2x32xf32>
    tpu.vector_store %arg4[%c0_47, %c32], %32 {strides = array<i32>} : memref<2x128xf32, #tpu.memory_space<vmem>>, vector<2x32xf32>,
    %c0_48 = arith.constant 0 : index
    %c64_49 = arith.constant 64 : index
    %150 = vector.load %arg4[%c0_48, %c64_49] : memref<2x128xf32, #tpu.memory_space<vmem>>, vector<2x6xf32>
    tpu.vector_store %arg4[%c0_48, %c64_49], %147 {strides = array<i32>} : memref<2x128xf32, #tpu.memory_space<vmem>>, vector<2x6xf32>,
    %cst_50 = arith.constant 0.000000e+00 : f32
    %151 = vector.broadcast %cst_50 : f32 to vector<2x58xf32>
    %c0_51 = arith.constant 0 : index
    %c70 = arith.constant 70 : index
    %152 = vector.load %arg4[%c0_51, %c70] : memref<2x128xf32, #tpu.memory_space<vmem>>, vector<2x58xf32>
    tpu.vector_store %arg4[%c0_51, %c70], %151 {strides = array<i32>} : memref<2x128xf32, #tpu.memory_space<vmem>>, vector<2x58xf32>,
    return
  }
  func.func @transform_0(%arg0: i32) -> (i32, i32) {
    %c0_i32 = arith.constant 0 : i32
    %c0_i32_0 = arith.constant 0 : i32
    %c0_i32_1 = arith.constant 0 : i32
    return %c0_i32, %c0_i32_0 : i32, i32
  }
  func.func @transform_1(%arg0: i32) -> (i32, i32, i32) {
    %c0_i32 = arith.constant 0 : i32
    %c0_i32_0 = arith.constant 0 : i32
    %c0_i32_1 = arith.constant 0 : i32
    %c0_i32_2 = arith.constant 0 : i32
    return %c0_i32, %c0_i32_0, %c0_i32_1 : i32, i32, i32
  }
  func.func @transform_2(%arg0: i32) -> (i32, i32) {
    %c0_i32 = arith.constant 0 : i32
    %c0_i32_0 = arith.constant 0 : i32
    %c0_i32_1 = arith.constant 0 : i32
    return %c0_i32, %c0_i32_0 : i32, i32
  }
  func.func @transform_3(%arg0: i32) -> (i32, i32) {
    %c0_i32 = arith.constant 0 : i32
    %c0_i32_0 = arith.constant 0 : i32
    %c0_i32_1 = arith.constant 0 : i32
    return %c0_i32, %c0_i32_0 : i32, i32
  }
}

</mosaic_0001>

<llo_original>
// kernel: vln_lxmert_visual_forward.1
$region0: #{vln_lxmert_visual_forward.1}
  #allocation0 [shape = 'u32[]', space=smem, size = 0x4, offset = 0x4, fixed_abs, tag = 'smem constant byte address 0x4 - core index']
  #allocation1 [shape = 'u32[144,128]{1,0:T(1,128)}', space=vmem, size = 0x12000, scoped, tag = 'internal scratch']
  %s0 = inlined_call_operand.vmem [shape: f32[2,192], index: 0, kind: input, shape index: {}]
  %s1 = inlined_call_operand.vmem [shape: f32[2,6,32], index: 1, kind: input, shape index: {}]
  %s2 = inlined_call_operand.vmem [shape: f32[176,32], index: 2, kind: input, shape index: {}]
  %s3 = inlined_call_operand.vmem [shape: f32[2,128], index: 3, kind: output, shape index: {}]
  %s4 = sld [smem:[#allocation0]]
  $region22: #{vln_lxmert_visual_forward.1} parent=0
    _
  %s6 = ssub.s32 1, %s4
  %s7 = scalar_select 0, %s6, %s4
  // Predicated region
  $region2: #{vln_lxmert_visual_forward.1} parent=0 // pred_check
    _
  $region3: #{vln_lxmert_visual_forward.1} parent=0 // pred_check_branch
    %9 = sbr.rel (0) target = $region5
  $region4: #{vln_lxmert_visual_forward.1} parent=0 // pred_region
    _
  $region5: #{vln_lxmert_visual_forward.1} parent=0 // pred_fallthru
    _
  // Predicated region
  $region6: #{vln_lxmert_visual_forward.1} parent=0 // pred_check
    _
  $region7: #{vln_lxmert_visual_forward.1} parent=0 // pred_check_branch
    %11 = sbr.rel (0) target = $region9
  $region8: #{vln_lxmert_visual_forward.1} parent=0 // pred_region
    _
  $region9: #{vln_lxmert_visual_forward.1} parent=0 // pred_fallthru
    _
  // Predicated region
  $region10: #{vln_lxmert_visual_forward.1} parent=0 // pred_check
    _
  $region11: #{vln_lxmert_visual_forward.1} parent=0 // pred_check_branch
    %13 = sbr.rel (0) target = $region13
  $region12: #{vln_lxmert_visual_forward.1} parent=0 // pred_region
    _
  $region13: #{vln_lxmert_visual_forward.1} parent=0 // pred_fallthru
    _
  %v14 = vld [vmem:[%s0] sm:$0xf]
  %v15 = vld [vmem:[%s2] sm:$0xff]
  %v16 = vld [vmem:[%s2 + $0x8] sm:$0xff]
  %v17 = vld [vmem:[%s2 + $0x10] sm:$0xff]
  %v18 = vld [vmem:[%s2 + $0x18] sm:$0xff]
  %v19 = vld [vmem:[%s2 + $0x20] sm:$0xff]
  %v20 = vld [vmem:[%s2 + $0x28] sm:$0xff]
  %v21 = vld [vmem:[%s2 + $0x30] sm:$0xff]
  %v22 = vld [vmem:[%s2 + $0x38] sm:$0xff]
  %v23 = vld [vmem:[%s2 + $0xa1] sm:$0x1]
  %v24 = vlaneseq
  %v25 = vshrl.u32 %v24, 7
  %v26 = vsub.s32 0, %v25
  %v27 = vrot.slane %v23, %v26
  %vm28 = vcmask 523264
  %v30 = vsel %vm28, %v14, 0
  %32 = vmatprep.subr.mxu0 0.0
  %33 = vmatpush1.msra.mxu0 %v15
  %34 = vmatprep.subr.mxu0 0.0
  %35 = vmatpush1.msra.mxu0 %v16
  %36 = vmatprep.subr.mxu0 0.0
  %37 = vmatpush1.msra.mxu0 %v17
  %38 = vmatprep.subr.mxu0 0.0
  %39 = vmatpush1.msra.mxu0 %v18
  %40 = vmatprep.subr.mxu0 0.0
  %41 = vmatpush1.msra.mxu0 %v19
  %42 = vmatprep.subr.mxu0 0.0
  %43 = vmatpush1.msra.mxu0 %v20
  %44 = vmatprep.subr.mxu0 0.0
  %45 = vmatpush1.msra.mxu0 %v21
  %46 = vmatprep.subr.mxu0 0.0
  %47 = vmatpush1.msra.mxu0 %v22
  %48 = vmatprep.subr.mxu0 0.0
  %49 = vmatpush1.msra.mxu0 0.0
  %50 = vmatprep.subr.mxu0 0.0
  %51 = vmatpush1.msra.mxu0 0.0
  %52 = vmatprep.subr.mxu0 0.0
  %53 = vmatpush1.msra.mxu0 0.0
  %54 = vmatprep.subr.mxu0 0.0
  %55 = vmatpush1.msra.mxu0 0.0
  %56 = vmatprep.subr.mxu0 0.0
  %57 = vmatpush1.msra.mxu0 0.0
  %58 = vmatprep.subr.mxu0 0.0
  %59 = vmatpush1.msra.mxu0 0.0
  %60 = vmatprep.subr.mxu0 0.0
  %61 = vmatpush1.msra.mxu0 0.0
  %62 = vmatprep.subr.mxu0 0.0
  %63 = vmatpush1.msra.mxu0 0.0
  %64 = vmatprep.subr.mxu0 0.0
  %65 = vmatpush1.msra.mxu0 0.0
  %66 = vmatprep.subr.mxu0 0.0
  %67 = vmatpush1.msra.mxu0 0.0
  %68 = vmatprep.subr.mxu0 0.0
  %69 = vmatpush1.msra.mxu0 0.0
  %70 = vmatprep.subr.mxu0 0.0
  %71 = vmatpush1.msra.mxu0 0.0
  %72 = vmatprep.subr.mxu0 0.0
  %73 = vmatpush1.msra.mxu0 0.0
  %74 = vmatprep.subr.mxu0 0.0
  %75 = vmatpush1.msra.mxu0 0.0
  %76 = vmatprep.subr.mxu0 0.0
  %77 = vmatpush1.msra.mxu0 0.0
  %78 = vmatprep.subr.mxu0 0.0
  %79 = vmatpush1.msra.mxu0 0.0
  %80 = vmatprep.subr.mxu0 0.0
  %81 = vmatpush1.msra.mxu0 0.0
  %82 = vmatprep.subr.mxu0 0.0
  %83 = vmatpush1.msra.mxu0 0.0
  %84 = vmatprep.subr.mxu0 0.0
  %85 = vmatpush1.msra.mxu0 0.0
  %86 = vmatprep.subr.mxu0 0.0
  %87 = vmatpush1.msra.mxu0 0.0
  %88 = vmatprep.subr.mxu0 0.0
  %89 = vmatpush1.msra.mxu0 0.0
  %90 = vmatprep.subr.mxu0 0.0
  %91 = vmatpush1.msra.mxu0 0.0
  %92 = vmatprep.subr.mxu0 0.0
  %93 = vmatpush1.msra.mxu0 0.0
  %94 = vmatprep.subr.mxu0 0.0
  %95 = vmatpush1.msra.mxu0 0.0
  %96 = vmatprep.mubr.f32.mxu0 0.0
  %97 = vmatmul.mubr.f32.gmra.mrb[0].mxu0 %v30
  %v98 = vpop.f32.mrb[0].mxu0
  %v99 = vadd.f32 %v27, %v98
  %v100 = vpop.f32.mrb[0].mxu0
  %101 = vdwg.mxu0
  %v102 = vld [vmem:[%s2 + $0xa2] sm:$0x1]
  %v103 = vld [vmem:[%s2 + $0xa3] sm:$0x1]
  %vm104 = vcmask 254976
  %v105 = vsel %vm104, %v99, 0.0
  %106 = vadd.xlane.f32.xlu0 %v105
  %v107 = vpop.xlane.xlu0 %106
  %v108 = vrcp.pop 32.0
  %v109 = vmul.f32 %v107, %v108
  %v110 = vsub.f32 %v99, %v109
  %v111 = vmul.f32 %v110, %v110
  %v112 = vsel %vm104, %v111, 0.0
  %113 = vadd.xlane.f32.xlu0 %v112
  %v114 = vpop.xlane.xlu0 %113
  %v115 = vmul.f32 %v114, %v108
  %v116 = vadd.f32 %v115, 1e-12
  %v117 = vrsqrt.pop %v116
  %v118 = vmul.f32 %v110, %v117
  %v119 = vlaneseq
  %v120 = vshrl.u32 %v119, 7
  %v121 = vsub.s32 0, %v120
  %v122 = vrot.slane %v102, %v121
  %v123 = vmul.f32 %v118, %v122
  %v124 = vlaneseq
  %v125 = vshrl.u32 %v124, 7
  %v126 = vsub.s32 0, %v125
  %v127 = vrot.slane %v103, %v126
  %v128 = vadd.f32 %v123, %v127
  %129 = vrot.lane.b32.xlu0 %v14, 96
  %v130 = vpop.permute.xlu0 %129
  %v131 = vrot.slane %v130, 2
  %vm132 = vcmask 785408
  %v133 = vsel %vm132, %v130, %v131
  %v135 = vmul.f32 %v14, %v133
  %v136 = vld [vmem:[%s2 + $0xa4] sm:$0x1]
  %v137 = vld [vmem:[%s2 + $0xa5] sm:$0x1]
  %v140 = vunpack.c.l.s4 1983009808
  %v141 = vunpack.c.0.s8 %v140
  %v142 = vlaneseq
  %v143 = vshrl.u32 %v142, 7
  %v144 = vsub.s32 %v141, %v143
  %v145 = vrot.slane %v135, %v144
  %146 = vrot.lane.b32.xlu0 %v145, 32
  %v147 = vpop.permute.xlu0 %146
  %v149 = vsel %vm104, %v147, 0.0
  %150 = vadd.xlane.f32.xlu0 %v149
  %v151 = vpop.xlane.xlu0 %150
  %v152 = vmul.f32 %v151, %v108
  %v153 = vsub.f32 %v135, %v152
  %v154 = vmul.f32 %v153, %v153
  %v157 = vunpack.c.l.s4 1983009808
  %v158 = vunpack.c.0.s8 %v157
  %v159 = vlaneseq
  %v160 = vshrl.u32 %v159, 7
  %v161 = vsub.s32 %v158, %v160
  %v162 = vrot.slane %v154, %v161
  %163 = vrot.lane.b32.xlu0 %v162, 32
  %v164 = vpop.permute.xlu0 %163
  %v166 = vsel %vm104, %v164, 0.0
  %167 = vadd.xlane.f32.xlu0 %v166
  %v168 = vpop.xlane.xlu0 %167
  %v169 = vmul.f32 %v168, %v108
  %v170 = vadd.f32 %v169, 1e-12
  %v171 = vrsqrt.pop %v170
  %v172 = vmul.f32 %v153, %v171
  %v173 = vlaneseq
  %v174 = vshrl.u32 %v173, 7
  %v175 = vsub.s32 0, %v174
  %v176 = vrot.slane %v136, %v175
  %v179 = vunpack.c.l.s4 1983009808
  %v180 = vunpack.c.0.s8 %v179
  %v181 = vlaneseq
  %v182 = vshrl.u32 %v181, 7
  %v183 = vsub.s32 %v180, %v182
  %v184 = vrot.slane %v176, %v183
  %185 = vrot.lane.b32.xlu0 %v184, 96
  %v186 = vpop.permute.xlu0 %185
  %v188 = vmul.f32 %v172, %v186
  %v189 = vlaneseq
  %v190 = vshrl.u32 %v189, 7
  %v191 = vsub.s32 0, %v190
  %v192 = vrot.slane %v137, %v191
  %v195 = vunpack.c.l.s4 1983009808
  %v196 = vunpack.c.0.s8 %v195
  %v197 = vlaneseq
  %v198 = vshrl.u32 %v197, 7
  %v199 = vsub.s32 %v196, %v198
  %v200 = vrot.slane %v192, %v199
  %201 = vrot.lane.b32.xlu0 %v200, 96
  %v202 = vpop.permute.xlu0 %201
  %v204 = vadd.f32 %v188, %v202
  %v206 = vunpack.c.l.s4 1983009808
  %v207 = vunpack.c.0.s8 %v206
  %v208 = vlaneseq
  %v209 = vshrl.u32 %v208, 7
  %v210 = vsub.s32 %v207, %v209
  %v211 = vrot.slane %v14, %v210
  %212 = vrot.lane.b32.xlu0 %v211, 64
  %v213 = vpop.permute.xlu0 %212
  %v217 = vunpack.c.l.s4 1983009808
  %v218 = vunpack.c.0.s8 %v217
  %v219 = vlaneseq
  %v220 = vshrl.u32 %v219, 7
  %v221 = vsub.s32 %v218, %v220
  %v222 = vrot.slane %v204, %v221
  %223 = vrot.lane.b32.xlu0 %v222, 64
  %v224 = vpop.permute.xlu0 %223
  %vm226 = vcmask 261120
  %v227 = vsel %vm226, %v213, %v224
  %v228 = vld [vmem:[%s2 + $0x40] sm:$0xff]
  %v229 = vld [vmem:[%s2 + $0x48] sm:$0xff]
  %v230 = vld [vmem:[%s2 + $0x50] sm:$0xff]
  %v231 = vld [vmem:[%s2 + $0x58] sm:$0xff]
  %v232 = vld [vmem:[%s2 + $0x60] sm:$0xff]
  %v233 = vld [vmem:[%s2 + $0x68] sm:$0xff]
  %v234 = vld [vmem:[%s2 + $0x70] sm:$0xff]
  %v235 = vld [vmem:[%s2 + $0x78] sm:$0xff]
  %v236 = vld [vmem:[%s2 + $0xa6] sm:$0x1]
  %v237 = vlaneseq
  %v238 = vshrl.u32 %v237, 7
  %v239 = vsub.s32 0, %v238
  %v240 = vrot.slane %v236, %v239
  %v242 = vsel %vm28, %v227, 0
  %244 = vmatprep.subr.mxu0 0.0
  %245 = vmatpush1.msra.mxu0 %v228
  %246 = vmatprep.subr.mxu0 0.0
  %247 = vmatpush1.msra.mxu0 %v229
  %248 = vmatprep.subr.mxu0 0.0
  %249 = vmatpush1.msra.mxu0 %v230
  %250 = vmatprep.subr.mxu0 0.0
  %251 = vmatpush1.msra.mxu0 %v231
  %252 = vmatprep.subr.mxu0 0.0
  %253 = vmatpush1.msra.mxu0 %v232
  %254 = vmatprep.subr.mxu0 0.0
  %255 = vmatpush1.msra.mxu0 %v233
  %256 = vmatprep.subr.mxu0 0.0
  %257 = vmatpush1.msra.mxu0 %v234
  %258 = vmatprep.subr.mxu0 0.0
  %259 = vmatpush1.msra.mxu0 %v235
  %260 = vmatprep.subr.mxu0 0.0
  %261 = vmatpush1.msra.mxu0 0.0
  %262 = vmatprep.subr.mxu0 0.0
  %263 = vmatpush1.msra.mxu0 0.0
  %264 = vmatprep.subr.mxu0 0.0
  %265 = vmatpush1.msra.mxu0 0.0
  %266 = vmatprep.subr.mxu0 0.0
  %267 = vmatpush1.msra.mxu0 0.0
  %268 = vmatprep.subr.mxu0 0.0
  %269 = vmatpush1.msra.mxu0 0.0
  %270 = vmatprep.subr.mxu0 0.0
  %271 = vmatpush1.msra.mxu0 0.0
  %272 = vmatprep.subr.mxu0 0.0
  %273 = vmatpush1.msra.mxu0 0.0
  %274 = vmatprep.subr.mxu0 0.0
  %275 = vmatpush1.msra.mxu0 0.0
  %276 = vmatprep.subr.mxu0 0.0
  %277 = vmatpush1.msra.mxu0 0.0
  %278 = vmatprep.subr.mxu0 0.0
  %279 = vmatpush1.msra.mxu0 0.0
  %280 = vmatprep.subr.mxu0 0.0
  %281 = vmatpush1.msra.mxu0 0.0
  %282 = vmatprep.subr.mxu0 0.0
  %283 = vmatpush1.msra.mxu0 0.0
  %284 = vmatprep.subr.mxu0 0.0
  %285 = vmatpush1.msra.mxu0 0.0
  %286 = vmatprep.subr.mxu0 0.0
  %287 = vmatpush1.msra.mxu0 0.0
  %288 = vmatprep.subr.mxu0 0.0
  %289 = vmatpush1.msra.mxu0 0.0
  %290 = vmatprep.subr.mxu0 0.0
  %291 = vmatpush1.msra.mxu0 0.0
  %292 = vmatprep.subr.mxu0 0.0
  %293 = vmatpush1.msra.mxu0 0.0
  %294 = vmatprep.subr.mxu0 0.0
  %295 = vmatpush1.msra.mxu0 0.0
  %296 = vmatprep.subr.mxu0 0.0
  %297 = vmatpush1.msra.mxu0 0.0
  %298 = vmatprep.subr.mxu0 0.0
  %299 = vmatpush1.msra.mxu0 0.0
  %300 = vmatprep.subr.mxu0 0.0
  %301 = vmatpush1.msra.mxu0 0.0
  %302 = vmatprep.subr.mxu0 0.0
  %303 = vmatpush1.msra.mxu0 0.0
  %304 = vmatprep.subr.mxu0 0.0
  %305 = vmatpush1.msra.mxu0 0.0
  %306 = vmatprep.subr.mxu0 0.0
  %307 = vmatpush1.msra.mxu0 0.0
  %308 = vmatprep.mubr.f32.mxu0 0.0
  %309 = vmatmul.mubr.f32.gmra.mrb[0].mxu0 %v242
  %v310 = vpop.f32.mrb[0].mxu0
  %v311 = vadd.f32 %v240, %v310
  %v312 = vpop.f32.mrb[0].mxu0
  %313 = vdwg.mxu0
  %v314 = vld [vmem:[%s2 + $0xa7] sm:$0x1]
  %v315 = vld [vmem:[%s2 + $0xa8] sm:$0x1]
  %v316 = vsel %vm104, %v311, 0.0
  %317 = vadd.xlane.f32.xlu0 %v316
  %v318 = vpop.xlane.xlu0 %317
  %v319 = vmul.f32 %v318, %v108
  %v320 = vsub.f32 %v311, %v319
  %v321 = vmul.f32 %v320, %v320
  %v322 = vsel %vm104, %v321, 0.0
  %323 = vadd.xlane.f32.xlu0 %v322
  %v324 = vpop.xlane.xlu0 %323
  %v325 = vmul.f32 %v324, %v108
  %v326 = vadd.f32 %v325, 1e-12
  %v327 = vrsqrt.pop %v326
  %v328 = vmul.f32 %v320, %v327
  %v329 = vlaneseq
  %v330 = vshrl.u32 %v329, 7
  %v331 = vsub.s32 0, %v330
  %v332 = vrot.slane %v314, %v331
  %v333 = vmul.f32 %v328, %v332
  %v334 = vlaneseq
  %v335 = vshrl.u32 %v334, 7
  %v336 = vsub.s32 0, %v335
  %v337 = vrot.slane %v315, %v336
  %v338 = vadd.f32 %v333, %v337
  %v339 = vld [vmem:[%s1] sm:$0x3f]
  %v340 = vld [vmem:[%s1 + $0x8] sm:$0x3f]
  %v342 = vunpack.c.l.s4 1966171168
  %v343 = vunpack.c.0.s8 %v342
  %v344 = vlaneseq
  %v345 = vshrl.u32 %v344, 7
  %v346 = vsub.s32 %v343, %v345
  %v347 = vrot.slane %v14, %v346
  %v348 = vcombine.high %v347, %v347
  %349 = vrot.lane.b32.xlu0 %v347, 96
  %v350 = vpop.permute.xlu0 %349
  %351 = vrot.lane.b32.xlu0 %v348, 96
  %v352 = vpop.permute.xlu0 %351
  %v353 = vrot.slane %v350, 1
  %v354 = vrot.slane %v352, 1
  %v355 = vlaneseq
  %v356 = vshrl.u32 %v355, 7
  %v357 = vsub.s32 0, %v356
  %v358 = vrot.slane %v353, %v357
  %v359 = vlaneseq
  %v360 = vshrl.u32 %v359, 7
  %v361 = vsub.s32 0, %v360
  %v362 = vrot.slane %v354, %v361
  %v365 = vmul.f32 %v339, %v358
  %v366 = vmul.f32 %v340, %v362
  %v367 = vld [vmem:[%s2 + $0x80] sm:$0xff]
  %v368 = vld [vmem:[%s2 + $0x88] sm:$0xff]
  %v369 = vld [vmem:[%s2 + $0x90] sm:$0xff]
  %v370 = vld [vmem:[%s2 + $0x98] sm:$0xff]
  %v371 = vld [vmem:[%s2 + $0xa9] sm:$0x1]
  %v372 = vlaneseq
  %v373 = vshrl.u32 %v372, 7
  %v374 = vsub.s32 0, %v373
  %v375 = vrot.slane %v371, %v374
  %v378 = vcombine.high %v365, %v365
  %v380 = vunpack.c.l.s4 1983009808
  %v381 = vunpack.c.0.s8 %v380
  %v382 = vlaneseq
  %v383 = vshrl.u32 %v382, 7
  %v384 = vsub.s32 %v381, %v383
  %v385 = vrot.slane %v365, %v384
  %v387 = vunpack.c.l.s4 1983009808
  %v388 = vunpack.c.0.s8 %v387
  %v389 = vlaneseq
  %v390 = vshrl.u32 %v389, 7
  %v391 = vsub.s32 %v388, %v390
  %v392 = vrot.slane %v378, %v391
  %v393 = vcombine.high %v385, %v385
  %v394 = vcombine.high %v366, %v366
  %v396 = vunpack.c.l.s4 1983009808
  %v397 = vunpack.c.0.s8 %v396
  %v398 = vlaneseq
  %v399 = vshrl.u32 %v398, 7
  %v400 = vsub.s32 %v397, %v399
  %v401 = vrot.slane %v366, %v400
  %v403 = vunpack.c.l.s4 1983009808
  %v404 = vunpack.c.0.s8 %v403
  %v405 = vlaneseq
  %v406 = vshrl.u32 %v405, 7
  %v407 = vsub.s32 %v404, %v406
  %v408 = vrot.slane %v394, %v407
  %v409 = vcombine.high %v401, %v401
  %v411 = vcombine.high %v375, %v375
  %v413 = vunpack.c.l.s4 1983009808
  %v414 = vunpack.c.0.s8 %v413
  %v415 = vlaneseq
  %v416 = vshrl.u32 %v415, 7
  %v417 = vsub.s32 %v414, %v416
  %v418 = vrot.slane %v375, %v417
  %v420 = vunpack.c.l.s4 1983009808
  %v421 = vunpack.c.0.s8 %v420
  %v422 = vlaneseq
  %v423 = vshrl.u32 %v422, 7
  %v424 = vsub.s32 %v421, %v423
  %v425 = vrot.slane %v411, %v424
  %v426 = vcombine.high %v418, %v418
  %v427 = vcombine.low %v385, %v393
  %v428 = vcombine.low %v392, %v401
  %v430 = vunpack.c.l.s4 1983009808
  %v431 = vunpack.c.0.s8 %v430
  %v432 = vlaneseq
  %v433 = vshrl.u32 %v432, 7
  %v434 = vsub.s32 %v431, %v433
  %v435 = vrot.slane %v427, %v434
  %v437 = vunpack.c.l.s4 1983009808
  %v438 = vunpack.c.0.s8 %v437
  %v439 = vlaneseq
  %v440 = vshrl.u32 %v439, 7
  %v441 = vsub.s32 %v438, %v440
  %v442 = vrot.slane %v428, %v441
  %v443 = vcombine.low %v435, %v442
  %v444 = vcombine.low %v409, %v408
  %v446 = vunpack.c.l.s4 1983009808
  %v447 = vunpack.c.0.s8 %v446
  %v448 = vlaneseq
  %v449 = vshrl.u32 %v448, 7
  %v450 = vsub.s32 %v447, %v449
  %v451 = vrot.slane %v444, %v450
  %v452 = vcombine.low %v418, %v426
  %v453 = vcombine.low %v425, %v418
  %v455 = vunpack.c.l.s4 1983009808
  %v456 = vunpack.c.0.s8 %v455
  %v457 = vlaneseq
  %v458 = vshrl.u32 %v457, 7
  %v459 = vsub.s32 %v456, %v458
  %v460 = vrot.slane %v452, %v459
  %v462 = vunpack.c.l.s4 1983009808
  %v463 = vunpack.c.0.s8 %v462
  %v464 = vlaneseq
  %v465 = vshrl.u32 %v464, 7
  %v466 = vsub.s32 %v463, %v465
  %v467 = vrot.slane %v453, %v466
  %v468 = vcombine.low %v460, %v467
  %v469 = vcombine.low %v426, %v425
  %v471 = vunpack.c.l.s4 1983009808
  %v472 = vunpack.c.0.s8 %v471
  %v473 = vlaneseq
  %v474 = vshrl.u32 %v473, 7
  %v475 = vsub.s32 %v472, %v474
  %v476 = vrot.slane %v469, %v475
  %v479 = vsel %vm226, %v443, 0
  %v481 = vsel %vm226, %v451, 0
  %483 = vmatprep.subr.mxu0 0.0
  %484 = vmatpush1.msra.mxu0 %v367
  %485 = vmatprep.subr.mxu0 0.0
  %486 = vmatpush1.msra.mxu0 %v368
  %487 = vmatprep.subr.mxu0 0.0
  %488 = vmatpush1.msra.mxu0 %v369
  %489 = vmatprep.subr.mxu0 0.0
  %490 = vmatpush1.msra.mxu0 %v370
  %491 = vmatprep.subr.mxu0 0.0
  %492 = vmatpush1.msra.mxu0 0.0
  %493 = vmatprep.subr.mxu0 0.0
  %494 = vmatpush1.msra.mxu0 0.0
  %495 = vmatprep.subr.mxu0 0.0
  %496 = vmatpush1.msra.mxu0 0.0
  %497 = vmatprep.subr.mxu0 0.0
  %498 = vmatpush1.msra.mxu0 0.0
  %499 = vmatprep.subr.mxu0 0.0
  %500 = vmatpush1.msra.mxu0 0.0
  %501 = vmatprep.subr.mxu0 0.0
  %502 = vmatpush1.msra.mxu0 0.0
  %503 = vmatprep.subr.mxu0 0.0
  %504 = vmatpush1.msra.mxu0 0.0
  %505 = vmatprep.subr.mxu0 0.0
  %506 = vmatpush1.msra.mxu0 0.0
  %507 = vmatprep.subr.mxu0 0.0
  %508 = vmatpush1.msra.mxu0 0.0
  %509 = vmatprep.subr.mxu0 0.0
  %510 = vmatpush1.msra.mxu0 0.0
  %511 = vmatprep.subr.mxu0 0.0
  %512 = vmatpush1.msra.mxu0 0.0
  %513 = vmatprep.subr.mxu0 0.0
  %514 = vmatpush1.msra.mxu0 0.0
  %515 = vmatprep.subr.mxu0 0.0
  %516 = vmatpush1.msra.mxu0 0.0
  %517 = vmatprep.subr.mxu0 0.0
  %518 = vmatpush1.msra.mxu0 0.0
  %519 = vmatprep.subr.mxu0 0.0
  %520 = vmatpush1.msra.mxu0 0.0
  %521 = vmatprep.subr.mxu0 0.0
  %522 = vmatpush1.msra.mxu0 0.0
  %523 = vmatprep.subr.mxu0 0.0
  %524 = vmatpush1.msra.mxu0 0.0
  %525 = vmatprep.subr.mxu0 0.0
  %526 = vmatpush1.msra.mxu0 0.0
  %527 = vmatprep.subr.mxu0 0.0
  %528 = vmatpush1.msra.mxu0 0.0
  %529 = vmatprep.subr.mxu0 0.0
  %530 = vmatpush1.msra.mxu0 0.0
  %531 = vmatprep.subr.mxu0 0.0
  %532 = vmatpush1.msra.mxu0 0.0
  %533 = vmatprep.subr.mxu0 0.0
  %534 = vmatpush1.msra.mxu0 0.0
  %535 = vmatprep.subr.mxu0 0.0
  %536 = vmatpush1.msra.mxu0 0.0
  %537 = vmatprep.subr.mxu0 0.0
  %538 = vmatpush1.msra.mxu0 0.0
  %539 = vmatprep.subr.mxu0 0.0
  %540 = vmatpush1.msra.mxu0 0.0
  %541 = vmatprep.subr.mxu0 0.0
  %542 = vmatpush1.msra.mxu0 0.0
  %543 = vmatprep.subr.mxu0 0.0
  %544 = vmatpush1.msra.mxu0 0.0
  %545 = vmatprep.subr.mxu0 0.0
  %546 = vmatpush1.msra.mxu0 0.0
  %547 = vmatprep.mubr.f32.mxu0 0.0
  %548 = vmatmul.mubr.f32.gmra.mrb[0].mxu0 %v479
  %v549 = vpop.f32.mrb[0].mxu0
  %v550 = vadd.f32 %v468, %v549
  %v551 = vpop.f32.mrb[0].mxu0
  %552 = vmatprep.mubr.f32.mxu0 0.0
  %553 = vmatmul.mubr.f32.gmra.mrb[0].mxu0 %v481
  %v554 = vpop.f32.mrb[0].mxu0
  %v555 = vadd.f32 %v476, %v554
  %v556 = vpop.f32.mrb[0].mxu0
  %557 = vdwg.mxu0
  %v560 = vcombine.high %v550, %v550
  %v562 = vunpack.c.l.s4 1983009808
  %v563 = vunpack.c.0.s8 %v562
  %v564 = vlaneseq
  %v565 = vshrl.u32 %v564, 7
  %v566 = vsub.s32 %v563, %v565
  %v567 = vrot.slane %v550, %v566
  %v569 = vunpack.c.l.s4 1983009808
  %v570 = vunpack.c.0.s8 %v569
  %v571 = vlaneseq
  %v572 = vshrl.u32 %v571, 7
  %v573 = vsub.s32 %v570, %v572
  %v574 = vrot.slane %v560, %v573
  %v575 = vcombine.high %v567, %v567
  %v576 = vcombine.high %v574, %v574
  %v578 = vunpack.c.l.s4 1983009808
  %v579 = vunpack.c.0.s8 %v578
  %v580 = vlaneseq
  %v581 = vshrl.u32 %v580, 7
  %v582 = vsub.s32 %v579, %v581
  %v583 = vrot.slane %v555, %v582
  %v584 = vcombine.high %v583, %v583
  %v591 = vmax.f32 %v567, 0.0
  %v592 = vmax.f32 %v575, 0.0
  %v593 = vmax.f32 %v574, 0.0
  %v594 = vmax.f32 %v576, 0.0
  %v595 = vmax.f32 %v583, 0.0
  %v596 = vmax.f32 %v584, 0.0
  %v597 = vld [vmem:[%s2 + $0xaa] sm:$0x1]
  %v598 = vld [vmem:[%s2 + $0xab] sm:$0x1]
  %v605 = vcombine.low %v591, %v592
  %v607 = vunpack.c.l.s4 1983009808
  %v608 = vunpack.c.0.s8 %v607
  %v609 = vlaneseq
  %v610 = vshrl.u32 %v609, 7
  %v611 = vsub.s32 %v608, %v610
  %v612 = vrot.slane %v605, %v611
  %v614 = vunpack.c.l.s4 1983009808
  %v615 = vunpack.c.0.s8 %v614
  %v616 = vlaneseq
  %v617 = vshrl.u32 %v616, 7
  %v618 = vsub.s32 %v615, %v617
  %v619 = vrot.slane %v593, %v618
  %v620 = vcombine.low %v612, %v619
  %v621 = vcombine.low %v594, %v595
  %v623 = vunpack.c.l.s4 1983009808
  %v624 = vunpack.c.0.s8 %v623
  %v625 = vlaneseq
  %v626 = vshrl.u32 %v625, 7
  %v627 = vsub.s32 %v624, %v626
  %v628 = vrot.slane %v621, %v627
  %v630 = vunpack.c.l.s4 1983009808
  %v631 = vunpack.c.0.s8 %v630
  %v632 = vlaneseq
  %v633 = vshrl.u32 %v632, 7
  %v634 = vsub.s32 %v631, %v633
  %v635 = vrot.slane %v596, %v634
  %v636 = vcombine.low %v628, %v635
  %vm639 = vcmask 259072
  %v640 = vsel %vm639, %v620, 0.0
  %641 = vadd.xlane.f32.xlu0 %v640
  %v642 = vpop.xlane.xlu0 %641
  %v643 = vsel %vm639, %v636, 0.0
  %644 = vadd.xlane.f32.xlu0 %v643
  %v645 = vpop.xlane.xlu0 %644
  %v646 = vmul.f32 %v642, %v108
  %v647 = vmul.f32 %v645, %v108
  %v651 = vunpack.c.l.s4 269488144
  %v652 = vunpack.c.0.s8 %v651
  %v653 = vlaneseq
  %v654 = vshrl.u32 %v653, 7
  %v655 = vsub.s32 %v652, %v654
  %v656 = vrot.slane %v646, %v655
  %v658 = vunpack.c.l.s4 842150450
  %v659 = vunpack.c.0.s8 %v658
  %v660 = vlaneseq
  %v661 = vshrl.u32 %v660, 7
  %v662 = vsub.s32 %v659, %v661
  %v663 = vrot.slane %v646, %v662
  %v665 = vunpack.c.l.s4 1414812756
  %v666 = vunpack.c.0.s8 %v665
  %v667 = vlaneseq
  %v668 = vshrl.u32 %v667, 7
  %v669 = vsub.s32 %v666, %v668
  %v670 = vrot.slane %v646, %v669
  %v672 = vunpack.c.l.s4 269488144
  %v673 = vunpack.c.0.s8 %v672
  %v674 = vlaneseq
  %v675 = vshrl.u32 %v674, 7
  %v676 = vsub.s32 %v673, %v675
  %v677 = vrot.slane %v647, %v676
  %v679 = vunpack.c.l.s4 842150450
  %v680 = vunpack.c.0.s8 %v679
  %v681 = vlaneseq
  %v682 = vshrl.u32 %v681, 7
  %v683 = vsub.s32 %v680, %v682
  %v684 = vrot.slane %v647, %v683
  %v686 = vunpack.c.l.s4 1414812756
  %v687 = vunpack.c.0.s8 %v686
  %v688 = vlaneseq
  %v689 = vshrl.u32 %v688, 7
  %v690 = vsub.s32 %v687, %v689
  %v691 = vrot.slane %v647, %v690
  %v698 = vsub.f32 %v591, %v656
  %v699 = vsub.f32 %v592, %v663
  %v700 = vsub.f32 %v593, %v670
  %v701 = vsub.f32 %v594, %v677
  %v702 = vsub.f32 %v595, %v684
  %v703 = vsub.f32 %v596, %v691
  %v704 = vmul.f32 %v698, %v698
  %v705 = vmul.f32 %v699, %v699
  %v706 = vmul.f32 %v700, %v700
  %v707 = vmul.f32 %v701, %v701
  %v708 = vmul.f32 %v702, %v702
  %v709 = vmul.f32 %v703, %v703
  %v716 = vcombine.low %v704, %v705
  %v718 = vunpack.c.l.s4 1983009808
  %v719 = vunpack.c.0.s8 %v718
  %v720 = vlaneseq
  %v721 = vshrl.u32 %v720, 7
  %v722 = vsub.s32 %v719, %v721
  %v723 = vrot.slane %v716, %v722
  %v725 = vunpack.c.l.s4 1983009808
  %v726 = vunpack.c.0.s8 %v725
  %v727 = vlaneseq
  %v728 = vshrl.u32 %v727, 7
  %v729 = vsub.s32 %v726, %v728
  %v730 = vrot.slane %v706, %v729
  %v731 = vcombine.low %v723, %v730
  %v732 = vcombine.low %v707, %v708
  %v734 = vunpack.c.l.s4 1983009808
  %v735 = vunpack.c.0.s8 %v734
  %v736 = vlaneseq
  %v737 = vshrl.u32 %v736, 7
  %v738 = vsub.s32 %v735, %v737
  %v739 = vrot.slane %v732, %v738
  %v741 = vunpack.c.l.s4 1983009808
  %v742 = vunpack.c.0.s8 %v741
  %v743 = vlaneseq
  %v744 = vshrl.u32 %v743, 7
  %v745 = vsub.s32 %v742, %v744
  %v746 = vrot.slane %v709, %v745
  %v747 = vcombine.low %v739, %v746
  %v750 = vsel %vm639, %v731, 0.0
  %751 = vadd.xlane.f32.xlu0 %v750
  %v752 = vpop.xlane.xlu0 %751
  %v753 = vsel %vm639, %v747, 0.0
  %754 = vadd.xlane.f32.xlu0 %v753
  %v755 = vpop.xlane.xlu0 %754
  %v756 = vmul.f32 %v752, %v108
  %v757 = vmul.f32 %v755, %v108
  %v758 = vadd.f32 %v756, 1e-12
  %v759 = vadd.f32 %v757, 1e-12
  %v760 = vrsqrt.pop %v758
  %v761 = vrsqrt.pop %v759
  %v765 = vunpack.c.l.s4 269488144
  %v766 = vunpack.c.0.s8 %v765
  %v767 = vlaneseq
  %v768 = vshrl.u32 %v767, 7
  %v769 = vsub.s32 %v766, %v768
  %v770 = vrot.slane %v760, %v769
  %v772 = vunpack.c.l.s4 842150450
  %v773 = vunpack.c.0.s8 %v772
  %v774 = vlaneseq
  %v775 = vshrl.u32 %v774, 7
  %v776 = vsub.s32 %v773, %v775
  %v777 = vrot.slane %v760, %v776
  %v779 = vunpack.c.l.s4 1414812756
  %v780 = vunpack.c.0.s8 %v779
  %v781 = vlaneseq
  %v782 = vshrl.u32 %v781, 7
  %v783 = vsub.s32 %v780, %v782
  %v784 = vrot.slane %v760, %v783
  %v786 = vunpack.c.l.s4 269488144
  %v787 = vunpack.c.0.s8 %v786
  %v788 = vlaneseq
  %v789 = vshrl.u32 %v788, 7
  %v790 = vsub.s32 %v787, %v789
  %v791 = vrot.slane %v761, %v790
  %v793 = vunpack.c.l.s4 842150450
  %v794 = vunpack.c.0.s8 %v793
  %v795 = vlaneseq
  %v796 = vshrl.u32 %v795, 7
  %v797 = vsub.s32 %v794, %v796
  %v798 = vrot.slane %v761, %v797
  %v800 = vunpack.c.l.s4 1414812756
  %v801 = vunpack.c.0.s8 %v800
  %v802 = vlaneseq
  %v803 = vshrl.u32 %v802, 7
  %v804 = vsub.s32 %v801, %v803
  %v805 = vrot.slane %v761, %v804
  %v812 = vmul.f32 %v698, %v770
  %v813 = vmul.f32 %v699, %v777
  %v814 = vmul.f32 %v700, %v784
  %v815 = vmul.f32 %v701, %v791
  %v816 = vmul.f32 %v702, %v798
  %v817 = vmul.f32 %v703, %v805
  %v818 = vlaneseq
  %v819 = vshrl.u32 %v818, 7
  %v820 = vsub.s32 0, %v819
  %v821 = vrot.slane %v597, %v820
  %v823 = vcombine.high %v821, %v821
  %v825 = vunpack.c.l.s4 1983009808
  %v826 = vunpack.c.0.s8 %v825
  %v827 = vlaneseq
  %v828 = vshrl.u32 %v827, 7
  %v829 = vsub.s32 %v826, %v828
  %v830 = vrot.slane %v821, %v829
  %v832 = vunpack.c.l.s4 1983009808
  %v833 = vunpack.c.0.s8 %v832
  %v834 = vlaneseq
  %v835 = vshrl.u32 %v834, 7
  %v836 = vsub.s32 %v833, %v835
  %v837 = vrot.slane %v823, %v836
  %v838 = vcombine.high %v830, %v830
  %v842 = vmul.f32 %v812, %v830
  %v843 = vmul.f32 %v813, %v838
  %v844 = vmul.f32 %v814, %v837
  %v845 = vmul.f32 %v815, %v830
  %v846 = vmul.f32 %v816, %v838
  %v847 = vmul.f32 %v817, %v837
  %v848 = vlaneseq
  %v849 = vshrl.u32 %v848, 7
  %v850 = vsub.s32 0, %v849
  %v851 = vrot.slane %v598, %v850
  %v853 = vcombine.high %v851, %v851
  %v855 = vunpack.c.l.s4 1983009808
  %v856 = vunpack.c.0.s8 %v855
  %v857 = vlaneseq
  %v858 = vshrl.u32 %v857, 7
  %v859 = vsub.s32 %v856, %v858
  %v860 = vrot.slane %v851, %v859
  %v862 = vunpack.c.l.s4 1983009808
  %v863 = vunpack.c.0.s8 %v862
  %v864 = vlaneseq
  %v865 = vshrl.u32 %v864, 7
  %v866 = vsub.s32 %v863, %v865
  %v867 = vrot.slane %v853, %v866
  %v868 = vcombine.high %v860, %v860
  %v872 = vadd.f32 %v842, %v860
  %v873 = vadd.f32 %v843, %v868
  %v874 = vadd.f32 %v844, %v867
  %v875 = vadd.f32 %v845, %v860
  %v876 = vadd.f32 %v846, %v868
  %v877 = vadd.f32 %v847, %v867
  %v878 = vld [vmem:[%s2 + $0xa0] sm:$0x1]
  %v879 = vld [vmem:[%s2 + $0xac] sm:$0x1]
  %v880 = vlaneseq
  %v881 = vshrl.u32 %v880, 7
  %v882 = vsub.s32 0, %v881
  %v883 = vrot.slane %v878, %v882
  %v885 = vcombine.high %v883, %v883
  %v887 = vunpack.c.l.s4 1983009808
  %v888 = vunpack.c.0.s8 %v887
  %v889 = vlaneseq
  %v890 = vshrl.u32 %v889, 7
  %v891 = vsub.s32 %v888, %v890
  %v892 = vrot.slane %v883, %v891
  %v894 = vunpack.c.l.s4 1983009808
  %v895 = vunpack.c.0.s8 %v894
  %v896 = vlaneseq
  %v897 = vshrl.u32 %v896, 7
  %v898 = vsub.s32 %v895, %v897
  %v899 = vrot.slane %v885, %v898
  %v900 = vcombine.high %v892, %v892
  %v904 = vmul.f32 %v872, %v892
  %v905 = vmul.f32 %v873, %v900
  %v906 = vmul.f32 %v874, %v899
  %v907 = vmul.f32 %v875, %v892
  %v908 = vmul.f32 %v876, %v900
  %v909 = vmul.f32 %v877, %v899
  %v916 = vcombine.low %v904, %v905
  %v918 = vunpack.c.l.s4 1983009808
  %v919 = vunpack.c.0.s8 %v918
  %v920 = vlaneseq
  %v921 = vshrl.u32 %v920, 7
  %v922 = vsub.s32 %v919, %v921
  %v923 = vrot.slane %v916, %v922
  %v925 = vunpack.c.l.s4 1983009808
  %v926 = vunpack.c.0.s8 %v925
  %v927 = vlaneseq
  %v928 = vshrl.u32 %v927, 7
  %v929 = vsub.s32 %v926, %v928
  %v930 = vrot.slane %v906, %v929
  %v931 = vcombine.low %v923, %v930
  %v932 = vcombine.low %v907, %v908
  %v934 = vunpack.c.l.s4 1983009808
  %v935 = vunpack.c.0.s8 %v934
  %v936 = vlaneseq
  %v937 = vshrl.u32 %v936, 7
  %v938 = vsub.s32 %v935, %v937
  %v939 = vrot.slane %v932, %v938
  %v941 = vunpack.c.l.s4 1983009808
  %v942 = vunpack.c.0.s8 %v941
  %v943 = vlaneseq
  %v944 = vshrl.u32 %v943, 7
  %v945 = vsub.s32 %v942, %v944
  %v946 = vrot.slane %v909, %v945
  %v947 = vcombine.low %v939, %v946
  %v950 = vsel %vm639, %v931, 0.0
  %951 = vadd.xlane.f32.xlu0 %v950
  %v952 = vpop.xlane.xlu0 %951
  %v953 = vsel %vm639, %v947, 0.0
  %954 = vadd.xlane.f32.xlu0 %v953
  %v955 = vpop.xlane.xlu0 %954
  %v956 = vlaneseq
  %v957 = vshrl.u32 %v956, 7
  %v958 = vsub.s32 0, %v957
  %v959 = vrot.slane %v879, %v958
  %v960 = vadd.f32 %v952, %v959
  %v961 = vadd.f32 %v955, %v959
  %962 = vst.msk [vmem:[%s3] sm:$0x3] %vm104, %v338
  %964 = vrot.lane.b32.xlu0 %v128, 32
  %v965 = vpop.permute.xlu0 %964
  %vm967 = vcmask 517376
  %968 = vst.msk [vmem:[%s3] sm:$0x3] %vm967, %v965
  %971 = vset.pattern.permute.xlu0 0
  %972 = vperm.xlu0 %971, %v960
  %v973 = vpop.permute.xlu0 %972
  %974 = vset.pattern.permute.xlu0 0
  %975 = vperm.xlu0 %974, %v961
  %v976 = vpop.permute.xlu0 %975
  %v977 = vlaneseq
  %v978 = vand.u32 %v977, 127
  %v979 = vadd.s32 %v978, 4294967232
  %v980 = vlaneseq
  %v981 = vshrl.u32 %v980, 7
  %v982 = vsub.s32 %v979, %v981
  %v983 = vrot.slane %v973, %v982
  %v984 = vlaneseq
  %v985 = vshrl.u32 %v984, 7
  %v986 = vsub.s32 %v979, %v985
  %v987 = vrot.slane %v976, %v986
  %vm988 = vcmask 1041409
  %v989 = vsel %vm988, %v987, %v983
  %vm991 = vcmask 566784
  %992 = vst.msk [vmem:[%s3] sm:$0x3] %vm991, %v989
  %vm993 = vcmask 1041968
  %994 = vst.msk [vmem:[%s3] sm:$0x3] %vm993, 0.0
  // Predicated region
  $region14: #{vln_lxmert_visual_forward.1} parent=0 // pred_check
    _
  $region15: #{vln_lxmert_visual_forward.1} parent=0 // pred_check_branch
    %996 = sbr.rel (0) target = $region17
  $region16: #{vln_lxmert_visual_forward.1} parent=0 // pred_region
    _
  $region17: #{vln_lxmert_visual_forward.1} parent=0 // pred_fallthru
    _
  // Predicated region
  $region18: #{vln_lxmert_visual_forward.1} parent=0 // pred_check
    _
  $region19: #{vln_lxmert_visual_forward.1} parent=0 // pred_check_branch
    %998 = sbr.rel (0) target = $region21
  $region20: #{vln_lxmert_visual_forward.1} parent=0 // pred_region
    _
  $region21: #{vln_lxmert_visual_forward.1} parent=0 // pred_fallthru
    _

</llo_original>
